<compile_context>
chip_gen: v7x
topology: tpu7x:2x2x1
jax: 0.10.0
libtpu: 0.0.40
codegen_flags: <defaults>
</compile_context>

<pallas_src>
import math

import jax
import jax.numpy as jnp
from jax.experimental import pallas as pl
from jax.experimental.pallas import tpu as pltpu


def _round_up(x, m):
    return (x + m - 1) // m * m


def _choose_tiling(B, block_b):
    """Pick (TB, n_tiles) for the batch/lane axis.

    Small B  -> one sublane-aligned tile (masked stores are irrelevant there).
    Large B  -> lane-dense tiles (TB % 128 == 0), even tile count so both
                TensorCores on v7x get work, TB sized to minimize padding.
    """
    if B <= 256:
        return _round_up(max(B, 1), 8), 1
    n_tiles = max(2, pl.cdiv(B, block_b))
    if n_tiles % 2:                       # prefer even tile count for 2-TC chips
        n_tiles += 1
    TB = _round_up(pl.cdiv(B, n_tiles), 128)
    return TB, n_tiles


def _make_kernel(num_layers):
    """Kernel for `num_layers` Linear layers (ReLU on all but the last).

    Ref layout (feature-major / batch-on-lanes):
      xT_ref  : (in_dim, TB)      lane-dense transposed X tile
      tau_ref : (1, TB)           lane-dense tau row
      params  : w0x (h0, in_dim), w0t (h0, 1), b0 (h0, 1),
                then (w_i (d_i, d_{i-1}), b_i (d_i, 1)) for i >= 1
      out_ref : (1, 1, TB)        lane-dense output row for this tile
    """

    def kernel(*refs):
        xT_ref, tau_ref = refs[0], refs[1]
        out_ref = refs[-1]
        p = refs[2:-1]

        xT = xT_ref[...].astype(jnp.float32)    # (in_dim, TB)
        tau = tau_ref[...]                       # (1, TB)

        # Layer 0, split form:  h0 = W0x @ X^T + w0_tau * tau + b0
        h = jnp.dot(p[0][...], xT, preferred_element_type=jnp.float32)
        h = h + p[1][...] * tau + p[2][...]
        if num_layers > 1:
            h = jnp.maximum(h, 0.0)

        for li in range(1, num_layers):
            w = p[2 * li + 1][...]               # (d_i, d_{i-1})
            b = p[2 * li + 2][...]               # (d_i, 1)
            h = jnp.dot(w, h, preferred_element_type=jnp.float32) + b
            if li != num_layers - 1:
                h = jnp.maximum(h, 0.0)

        # Last layer has out_dim == 1 -> h is (1, TB): lane-dense store.
        out_ref[...] = h.reshape(out_ref.shape).astype(out_ref.dtype)

    return kernel


def sqrnet_forward(X, params, tau=None, *, key=None, block_b=8192, x_dtype=None):
    """Pallas implementation of sqrNet.forward.

    X:       (B, in_dim) float32
    params:  list of (W, b) in PyTorch layout: W (out_features, in_features),
             b (out_features,). params[0] consumes [X, tau] (in_dim + 1 inputs).
    tau:     None (-> uniform random per row, needs `key`) or a scalar.
    x_dtype: optional dtype (e.g. jnp.bfloat16) to cast X to before the kernel
             (halves input HBM traffic; accumulation stays f32).
    Returns (Q, tau) with Q (B, 1) and tau (B, 1), matching the PyTorch module.
    """
    B, in_dim = X.shape
    out_dtype = jnp.float32
    num_layers = len(params)

    # tau generation (torch.rand equivalent) stays in the host wrapper.
    if tau is None:
        assert key is not None, "need a PRNG key when tau is None"
        tau_col = jax.random.uniform(key, (B, 1), dtype=jnp.float32)
    else:
        tau_col = jnp.full((B, 1), tau, dtype=jnp.float32)

    # ---- batch tiling ------------------------------------------------------
    TB, n_tiles = _choose_tiling(B, block_b)
    B_pad = n_tiles * TB

    # ---- X transposed to (in_dim, B_pad): lane-dense batch axis -------------
    XT = X.astype(x_dtype).T if x_dtype is not None else X.T      # (in_dim, B)
    if B_pad != B:
        XT = jnp.pad(XT, ((0, 0), (0, B_pad - B)))
    tau_row = tau_col.reshape(1, B)
    if B_pad != B:
        tau_row = jnp.pad(tau_row, ((0, 0), (0, B_pad - B)))

    # ---- params in feature-major-friendly layout ---------------------------
    w0, b0 = params[0]                      # (h0, in_dim + 1), (h0,)
    flat = [
        w0[:, :in_dim],                     # (h0, in_dim)   X part of layer 0
        w0[:, in_dim:in_dim + 1],           # (h0, 1)        tau column
        b0.reshape(-1, 1),                  # (h0, 1)
    ]
    for (w, b) in params[1:]:
        flat.append(w)                      # (d, d_prev)
        flat.append(b.reshape(-1, 1))       # (d, 1)

    # Constant index_map -> weights stay resident in VMEM across grid steps.
    def _const_spec(arr):
        return pl.BlockSpec(arr.shape, lambda i: (0, 0))

    in_specs = (
        [pl.BlockSpec((in_dim, TB), lambda i: (0, i)),   # X^T tile (lane-dense)
         pl.BlockSpec((1, TB), lambda i: (0, i))]        # tau row tile
        + [_const_spec(p) for p in flat]
    )
    out_specs = pl.BlockSpec((1, 1, TB), lambda i: (i, 0, 0))

    q_slab = pl.pallas_call(
        _make_kernel(num_layers),
        grid=(n_tiles,),
        in_specs=in_specs,
        out_specs=out_specs,
        out_shape=jax.ShapeDtypeStruct((n_tiles, 1, TB), out_dtype),
        compiler_params=pltpu.CompilerParams(
            dimension_semantics=("parallel",),
            # Transposed-X blocks are tiny; 32 MiB is ample headroom on all
            # generations (fits v7x's 64 MiB physical, > v5e's 16 MiB default).
            vmem_limit_bytes=32 * 1024 * 1024),
    )(XT, tau_row, *flat)

    Q = q_slab.reshape(B_pad, 1)[:B]
    return Q, tau_col


def init_params(key, in_dim, hiddens):
    """PyTorch nn.Linear-style init: W (out, in), b (out,), U(+-1/sqrt(fan_in))."""
    dims = [in_dim + 1] + list(hiddens) + [1]
    params = []
    for i in range(1, len(dims)):
        key, kw, kb = jax.random.split(key, 3)
        fan_in = dims[i - 1]
        bound = 1.0 / math.sqrt(fan_in)
        w = jax.random.uniform(kw, (dims[i], dims[i - 1]),
                               minval=-bound, maxval=bound, dtype=jnp.float32)
        b = jax.random.uniform(kb, (dims[i],),
                               minval=-bound, maxval=bound, dtype=jnp.float32)
        params.append((w, b))
    return params


def reference_forward(X, params, tau_col):
    """Pure-JAX reference matching the PyTorch module."""
    h = jnp.concatenate([X, tau_col], axis=1)
    for li, (w, b) in enumerate(params):
        h = h @ w.T + b
        if li != len(params) - 1:
            h = jnp.maximum(h, 0.0)
    return h


if __name__ == "__main__":
    key = jax.random.PRNGKey(0)
    k_x, k_tau, k_params, k_big, k_med = jax.random.split(key, 5)

    B, in_dim = 8, 4
    hiddens = (32, 16)

    X = jax.random.normal(k_x, (B, in_dim), dtype=jnp.float32)
    params = init_params(k_params, in_dim, hiddens)

    # Case 1: tau=None -> random per-row tau (generated in wrapper, like torch.rand).
    Q1, tau1 = sqrnet_forward(X, params, tau=None, key=k_tau)
    # Case 2: fixed scalar tau, single small tile.
    Q2, tau2 = sqrnet_forward(X, params, tau=0.5)

    # Case 3: multi-tile grid (4 lane-dense tiles) + remainder padding path.
    Bb = 300
    Xb = jax.random.normal(k_big, (Bb, in_dim), dtype=jnp.float32)
    Q3, tau3 = sqrnet_forward(Xb, params, tau=0.25, block_b=128)

    # Case 4: default block_b, medium B -> 2 even tiles (v7x megacore path).
    Bm = 600
    Xm = jax.random.normal(k_med, (Bm, in_dim), dtype=jnp.float32)
    Q4, tau4 = sqrnet_forward(Xm, params, tau=0.75)

    # Case 5: bf16-X fast path (halved input HBM traffic, f32 accumulation).
    Q5, tau5 = sqrnet_forward(Xm, params, tau=0.75, x_dtype=jnp.bfloat16)

    jax.block_until_ready((Q1, tau1, Q2, tau2, Q3, tau3, Q4, tau4, Q5, tau5))

    # Correctness checks against the pure-JAX reference.
    ref1 = reference_forward(X, params, tau1)
    ref2 = reference_forward(X, params, tau2)
    ref3 = reference_forward(Xb, params, tau3)
    ref4 = reference_forward(Xm, params, tau4)
    assert jnp.allclose(Q1, ref1, atol=1e-5, rtol=1e-5)
    assert jnp.allclose(Q2, ref2, atol=1e-5, rtol=1e-5)
    assert jnp.allclose(Q3, ref3, atol=1e-5, rtol=1e-5)
    assert jnp.allclose(Q4, ref4, atol=1e-5, rtol=1e-5)
    assert jnp.allclose(Q5, ref4, atol=1e-1, rtol=1e-1)   # bf16 input, loose
    assert jnp.all(jnp.isfinite(Q5))
    assert Q1.shape == (B, 1) and tau1.shape == (B, 1)
    assert Q3.shape == (Bb, 1) and tau3.shape == (Bb, 1)
    assert Q4.shape == (Bm, 1) and tau4.shape == (Bm, 1)

    print("KERNEL_OK")
</pallas_src>

<mosaic_0001>
module attributes {stable_mosaic.version = 11 : i64} {
  func.func @kernel(%arg0: i32, %arg1: memref<4x8xf32, #tpu.memory_space<vmem>>, %arg2: memref<1x8xf32, #tpu.memory_space<vmem>>, %arg3: memref<32x4xf32, #tpu.memory_space<vmem>>, %arg4: memref<32x1xf32, #tpu.memory_space<vmem>>, %arg5: memref<32x1xf32, #tpu.memory_space<vmem>>, %arg6: memref<16x32xf32, #tpu.memory_space<vmem>>, %arg7: memref<16x1xf32, #tpu.memory_space<vmem>>, %arg8: memref<1x16xf32, #tpu.memory_space<vmem>>, %arg9: memref<1x1xf32, #tpu.memory_space<vmem>>, %arg10: memref<1x1x8xf32, #tpu.memory_space<vmem>>) attributes {dimension_semantics = [#tpu.dimension_semantics<parallel>], iteration_bounds = array<i64: 1>, scalar_prefetch = 0 : i64, scratch_operands = 0 : i64, tpu.core_type = #tpu.core_type<tc>, window_params = [{transform_indices = @transform_0, window_bounds = array<i64: 4, 8>}, {transform_indices = @transform_1, window_bounds = array<i64: 1, 8>}, {pipeline_mode = #tpu.pipeline_mode<synchronous>, transform_indices = @transform_2, window_bounds = array<i64: 32, 4>}, {pipeline_mode = #tpu.pipeline_mode<synchronous>, transform_indices = @transform_3, window_bounds = array<i64: 32, 1>}, {pipeline_mode = #tpu.pipeline_mode<synchronous>, transform_indices = @transform_4, window_bounds = array<i64: 32, 1>}, {pipeline_mode = #tpu.pipeline_mode<synchronous>, transform_indices = @transform_5, window_bounds = array<i64: 16, 32>}, {pipeline_mode = #tpu.pipeline_mode<synchronous>, transform_indices = @transform_6, window_bounds = array<i64: 16, 1>}, {pipeline_mode = #tpu.pipeline_mode<synchronous>, transform_indices = @transform_7, window_bounds = array<i64: 1, 16>}, {pipeline_mode = #tpu.pipeline_mode<synchronous>, transform_indices = @transform_8, window_bounds = array<i64: 1, 1>}, {transform_indices = @transform_9, window_bounds = array<i64: 1, 1, 8>}]} {
    %c0 = arith.constant 0 : index
    %c0_0 = arith.constant 0 : index
    %0 = vector.load %arg1[%c0, %c0_0] : memref<4x8xf32, #tpu.memory_space<vmem>>, vector<4x8xf32>
    %c0_1 = arith.constant 0 : index
    %c0_2 = arith.constant 0 : index
    %1 = vector.load %arg2[%c0_1, %c0_2] : memref<1x8xf32, #tpu.memory_space<vmem>>, vector<1x8xf32>
    %c0_3 = arith.constant 0 : index
    %c0_4 = arith.constant 0 : index
    %2 = vector.load %arg3[%c0_3, %c0_4] : memref<32x4xf32, #tpu.memory_space<vmem>>, vector<32x4xf32>
    %cst = arith.constant dense<0.000000e+00> : vector<32x8xf32>
    %3 = tpu.matmul %2, %0, %cst {dimension_numbers = #tpu.dot_dimension_numbers<[1], [0], [0], [1], [0, 0, 1, 1], [], []>} : vector<32x4xf32>, vector<4x8xf32>, vector<32x8xf32> -> vector<32x8xf32>
    %c0_5 = arith.constant 0 : index
    %c0_6 = arith.constant 0 : index
    %4 = vector.load %arg4[%c0_5, %c0_6] : memref<32x1xf32, #tpu.memory_space<vmem>>, vector<32x1xf32>
    %5 = vector.broadcast %4 : vector<32x1xf32> to vector<32x8xf32>
    %6 = vector.broadcast %1 : vector<1x8xf32> to vector<32x8xf32>
    %7 = arith.mulf %5, %6 : vector<32x8xf32>
    %8 = arith.addf %3, %7 : vector<32x8xf32>
    %c0_7 = arith.constant 0 : index
    %c0_8 = arith.constant 0 : index
    %9 = vector.load %arg5[%c0_7, %c0_8] : memref<32x1xf32, #tpu.memory_space<vmem>>, vector<32x1xf32>
    %10 = vector.broadcast %9 : vector<32x1xf32> to vector<32x8xf32>
    %11 = arith.addf %8, %10 : vector<32x8xf32>
    %cst_9 = arith.constant 0.000000e+00 : f32
    %12 = vector.broadcast %cst_9 : f32 to vector<32x8xf32>
    %13 = arith.maximumf %11, %12 : vector<32x8xf32>
    %c0_10 = arith.constant 0 : index
    %c0_11 = arith.constant 0 : index
    %14 = vector.load %arg6[%c0_10, %c0_11] : memref<16x32xf32, #tpu.memory_space<vmem>>, vector<16x32xf32>
    %c0_12 = arith.constant 0 : index
    %c0_13 = arith.constant 0 : index
    %15 = vector.load %arg7[%c0_12, %c0_13] : memref<16x1xf32, #tpu.memory_space<vmem>>, vector<16x1xf32>
    %cst_14 = arith.constant dense<0.000000e+00> : vector<16x8xf32>
    %16 = tpu.matmul %14, %13, %cst_14 {dimension_numbers = #tpu.dot_dimension_numbers<[1], [0], [0], [1], [0, 0, 1, 1], [], []>} : vector<16x32xf32>, vector<32x8xf32>, vector<16x8xf32> -> vector<16x8xf32>
    %17 = vector.broadcast %15 : vector<16x1xf32> to vector<16x8xf32>
    %18 = arith.addf %16, %17 : vector<16x8xf32>
    %cst_15 = arith.constant 0.000000e+00 : f32
    %19 = vector.broadcast %cst_15 : f32 to vector<16x8xf32>
    %20 = arith.maximumf %18, %19 : vector<16x8xf32>
    %c0_16 = arith.constant 0 : index
    %c0_17 = arith.constant 0 : index
    %21 = vector.load %arg8[%c0_16, %c0_17] : memref<1x16xf32, #tpu.memory_space<vmem>>, vector<1x16xf32>
    %c0_18 = arith.constant 0 : index
    %c0_19 = arith.constant 0 : index
    %22 = vector.load %arg9[%c0_18, %c0_19] : memref<1x1xf32, #tpu.memory_space<vmem>>, vector<1x1xf32>
    %cst_20 = arith.constant dense<0.000000e+00> : vector<1x8xf32>
    %23 = tpu.matmul %21, %20, %cst_20 {dimension_numbers = #tpu.dot_dimension_numbers<[1], [0], [0], [1], [0, 0, 1, 1], [], []>} : vector<1x16xf32>, vector<16x8xf32>, vector<1x8xf32> -> vector<1x8xf32>
    %24 = vector.broadcast %22 : vector<1x1xf32> to vector<1x8xf32>
    %25 = arith.addf %23, %24 : vector<1x8xf32>
    %26 = vector.shape_cast %25 : vector<1x8xf32> to vector<1x1x8xf32>
    %c0_21 = arith.constant 0 : index
    %c0_22 = arith.constant 0 : index
    %c0_23 = arith.constant 0 : index
    %27 = vector.load %arg10[%c0_21, %c0_22, %c0_23] : memref<1x1x8xf32, #tpu.memory_space<vmem>>, vector<1x1x8xf32>
    tpu.vector_store %arg10[%c0_21, %c0_22, %c0_23], %26 {strides = array<i32>} : memref<1x1x8xf32, #tpu.memory_space<vmem>>, vector<1x1x8xf32>,
    return
  }
  func.func @transform_0(%arg0: i32) -> (i32, i32) {
    %c0_i32 = arith.constant 0 : i32
    %c0_i32_0 = arith.constant 0 : i32
    return %c0_i32, %arg0 : i32, i32
  }
  func.func @transform_1(%arg0: i32) -> (i32, i32) {
    %c0_i32 = arith.constant 0 : i32
    %c0_i32_0 = arith.constant 0 : i32
    return %c0_i32, %arg0 : i32, i32
  }
  func.func @transform_2(%arg0: i32) -> (i32, i32) {
    %c0_i32 = arith.constant 0 : i32
    %c0_i32_0 = arith.constant 0 : i32
    %c0_i32_1 = arith.constant 0 : i32
    return %c0_i32, %c0_i32_0 : i32, i32
  }
  func.func @transform_3(%arg0: i32) -> (i32, i32) {
    %c0_i32 = arith.constant 0 : i32
    %c0_i32_0 = arith.constant 0 : i32
    %c0_i32_1 = arith.constant 0 : i32
    return %c0_i32, %c0_i32_0 : i32, i32
  }
  func.func @transform_4(%arg0: i32) -> (i32, i32) {
    %c0_i32 = arith.constant 0 : i32
    %c0_i32_0 = arith.constant 0 : i32
    %c0_i32_1 = arith.constant 0 : i32
    return %c0_i32, %c0_i32_0 : i32, i32
  }
  func.func @transform_5(%arg0: i32) -> (i32, i32) {
    %c0_i32 = arith.constant 0 : i32
    %c0_i32_0 = arith.constant 0 : i32
    %c0_i32_1 = arith.constant 0 : i32
    return %c0_i32, %c0_i32_0 : i32, i32
  }
  func.func @transform_6(%arg0: i32) -> (i32, i32) {
    %c0_i32 = arith.constant 0 : i32
    %c0_i32_0 = arith.constant 0 : i32
    %c0_i32_1 = arith.constant 0 : i32
    return %c0_i32, %c0_i32_0 : i32, i32
  }
  func.func @transform_7(%arg0: i32) -> (i32, i32) {
    %c0_i32 = arith.constant 0 : i32
    %c0_i32_0 = arith.constant 0 : i32
    %c0_i32_1 = arith.constant 0 : i32
    return %c0_i32, %c0_i32_0 : i32, i32
  }
  func.func @transform_8(%arg0: i32) -> (i32, i32) {
    %c0_i32 = arith.constant 0 : i32
    %c0_i32_0 = arith.constant 0 : i32
    %c0_i32_1 = arith.constant 0 : i32
    return %c0_i32, %c0_i32_0 : i32, i32
  }
  func.func @transform_9(%arg0: i32) -> (i32, i32, i32) {
    %c0_i32 = arith.constant 0 : i32
    %c0_i32_0 = arith.constant 0 : i32
    %c0_i32_1 = arith.constant 0 : i32
    return %arg0, %c0_i32, %c0_i32_0 : i32, i32, i32
  }
}

</mosaic_0001>

<llo_original>
// kernel: tpu_custom_call.1
$region0: #{tpu_custom_call.1}
  #allocation0 [shape = 'u32[]', space=smem, size = 0x4, offset = 0x4, fixed_abs, tag = 'smem constant byte address 0x4 - core index']
  #allocation1 [shape = 'u32[144,128]{1,0:T(1,128)}', space=vmem, size = 0x12000, scoped, tag = 'internal scratch']
  #allocation2 [shape = 'f32[1,1]{1,0:T(1,128)S(1)}', space=vmem, size = 0x200, scoped, tag = 'scoped memory for tpu_custom_call.1']
  %s0 = inlined_call_operand.vmem [shape: f32[4,8], index: 0, kind: input, shape index: {}]
  %s1 = inlined_call_operand.vmem [shape: f32[1,8], index: 1, kind: input, shape index: {}]
  %s2 = inlined_call_operand.vmem [shape: f32[32,4], index: 2, kind: input, shape index: {}]
  %s3 = inlined_call_operand.vmem [shape: f32[32,1], index: 3, kind: input, shape index: {}]
  %s4 = inlined_call_operand.vmem [shape: f32[32,1], index: 4, kind: input, shape index: {}]
  %s5 = inlined_call_operand.vmem [shape: f32[16,32], index: 5, kind: input, shape index: {}]
  %s6 = inlined_call_operand.vmem [shape: f32[16,1], index: 6, kind: input, shape index: {}]
  %s7 = inlined_call_operand.vmem [shape: f32[1,16], index: 7, kind: input, shape index: {}]
  %s8 = inlined_call_operand.<no memory space> [shape: f32[1,1], index: 8, kind: input, shape index: {}]
  %s9 = inlined_call_operand.hbm [shape: f32[1,1,8], index: 9, kind: output, shape index: {}]
  %s10 = sld [smem:[#allocation0]]
  $region46: #{tpu_custom_call.1} parent=0
    _
  %s12 = ssub.s32 1, %s10
  %s13 = scalar_select 0, %s12, %s10
  %v14 = vstv %s8
  %15 = vst [vmem:[#allocation2] sm:$0x1] %v14
  $region1: #{tpu_custom_call.1} parent=0
    #allocation3 [shape = 'u8[512]{0}', space=vmem, size = 0x400, scoped, tag = 'output window, operand 0, single buffered']
    #allocation4 [shape = 's32[1]{0}', space=sflag, size = 0x4, scoped, tag = 'scoped memory for tpu_custom_call.1']
    %16 = vsyncpa [#allocation4], 0
    // Predicated region
    $region2: #{tpu_custom_call.1} parent=1 // pred_check
      _
    $region3: #{tpu_custom_call.1} parent=1 // pred_check_branch
      %18 = sbr.rel (0) target = $region5
    $region4: #{tpu_custom_call.1} parent=1 // pred_region
      _
    $region5: #{tpu_custom_call.1} parent=1 // pred_fallthru
      _
    // Predicated region
    $region6: #{tpu_custom_call.1} parent=1 // pred_check
      _
    $region7: #{tpu_custom_call.1} parent=1 // pred_check_branch
      %20 = sbr.rel (0) target = $region9
    $region8: #{tpu_custom_call.1} parent=1 // pred_region
      _
    $region9: #{tpu_custom_call.1} parent=1 // pred_fallthru
      _
    // Predicated region
    $region10: #{tpu_custom_call.1} parent=1 // pred_check
      _
    $region11: #{tpu_custom_call.1} parent=1 // pred_check_branch
      %22 = sbr.rel (0) target = $region13
    $region12: #{tpu_custom_call.1} parent=1 // pred_region
      _
    $region13: #{tpu_custom_call.1} parent=1 // pred_fallthru
      _
    // Predicated region
    $region14: #{tpu_custom_call.1} parent=1 // pred_check
      _
    $region15: #{tpu_custom_call.1} parent=1 // pred_check_branch
      %24 = sbr.rel (0) target = $region17
    $region16: #{tpu_custom_call.1} parent=1 // pred_region
      _
    $region17: #{tpu_custom_call.1} parent=1 // pred_fallthru
      _
    // Predicated region
    $region18: #{tpu_custom_call.1} parent=1 // pred_check
      _
    $region19: #{tpu_custom_call.1} parent=1 // pred_check_branch
      %26 = sbr.rel (0) target = $region21
    $region20: #{tpu_custom_call.1} parent=1 // pred_region
      _
    $region21: #{tpu_custom_call.1} parent=1 // pred_fallthru
      _
    // Predicated region
    $region22: #{tpu_custom_call.1} parent=1 // pred_check
      _
    $region23: #{tpu_custom_call.1} parent=1 // pred_check_branch
      %28 = sbr.rel (0) target = $region25
    $region24: #{tpu_custom_call.1} parent=1 // pred_region
      _
    $region25: #{tpu_custom_call.1} parent=1 // pred_fallthru
      _
    // Predicated region
    $region26: #{tpu_custom_call.1} parent=1 // pred_check
      _
    $region27: #{tpu_custom_call.1} parent=1 // pred_check_branch
      %30 = sbr.rel (0) target = $region29
    $region28: #{tpu_custom_call.1} parent=1 // pred_region
      _
    $region29: #{tpu_custom_call.1} parent=1 // pred_fallthru
      _
    // Predicated region
    $region30: #{tpu_custom_call.1} parent=1 // pred_check
      _
    $region31: #{tpu_custom_call.1} parent=1 // pred_check_branch
      %32 = sbr.rel (0) target = $region33
    $region32: #{tpu_custom_call.1} parent=1 // pred_region
      _
    $region33: #{tpu_custom_call.1} parent=1 // pred_fallthru
      _
    // Predicated region
    $region34: #{tpu_custom_call.1} parent=1 // pred_check
      _
    $region35: #{tpu_custom_call.1} parent=1 // pred_check_branch
      %34 = sbr.rel (0) target = $region37
    $region36: #{tpu_custom_call.1} parent=1 // pred_region
      _
    $region37: #{tpu_custom_call.1} parent=1 // pred_fallthru
      _
    %v35 = vld [vmem:[%s0] sm:$0xf]
    %v36 = vld [vmem:[%s1] sm:$0x1]
    %v37 = vld [vmem:[%s2] sm:$0xff]
    %v38 = vld [vmem:[%s2 + $0x8] sm:$0xff]
    %v39 = vld [vmem:[%s2 + $0x10] sm:$0xff]
    %v40 = vld [vmem:[%s2 + $0x18] sm:$0xff]
    %v41 = vld [vmem:[%s3] sm:$0xff]
    %v42 = vld [vmem:[%s3 + $0x8] sm:$0xff]
    %v43 = vld [vmem:[%s3 + $0x10] sm:$0xff]
    %v44 = vld [vmem:[%s3 + $0x18] sm:$0xff]
    %46 = vset.pattern.permute.xlu0 0
    %47 = vperm.xlu0 %46, %v41
    %v48 = vpop.permute.xlu0 %47
    %51 = vset.pattern.permute.xlu0 0
    %52 = vperm.xlu0 %51, %v42
    %v53 = vpop.permute.xlu0 %52
    %56 = vset.pattern.permute.xlu0 0
    %57 = vperm.xlu0 %56, %v43
    %v58 = vpop.permute.xlu0 %57
    %61 = vset.pattern.permute.xlu0 0
    %62 = vperm.xlu0 %61, %v44
    %v63 = vpop.permute.xlu0 %62
    %v66 = vlaneseq
    %v67 = vshrl.u32 %v66, 7
    %v68 = vsub.s32 0, %v67
    %v69 = vrot.slane %v36, %v68
    %v71 = vmul.f32 %v48, %v69
    %v72 = vmul.f32 %v53, %v69
    %v73 = vmul.f32 %v58, %v69
    %v74 = vmul.f32 %v63, %v69
    %vm75 = vcmask 31744
    %v77 = vsel %vm75, %v37, 0
    %v80 = vsel %vm75, %v38, 0
    %v83 = vsel %vm75, %v39, 0
    %v86 = vsel %vm75, %v40, 0
    %vm88 = vcmask 1043456
    %v90 = vsel %vm88, %v35, 0
    %92 = vmatprep.subr.mxu0 0.0
    %93 = vmatpush1.msra.mxu0 %v90
    %94 = vmatprep.subr.mxu0 0.0
    %95 = vmatpush1.msra.mxu0 0.0
    %96 = vmatprep.subr.mxu0 0.0
    %97 = vmatpush1.msra.mxu0 0.0
    %98 = vmatprep.subr.mxu0 0.0
    %99 = vmatpush1.msra.mxu0 0.0
    %100 = vmatprep.subr.mxu0 0.0
    %101 = vmatpush1.msra.mxu0 0.0
    %102 = vmatprep.subr.mxu0 0.0
    %103 = vmatpush1.msra.mxu0 0.0
    %104 = vmatprep.subr.mxu0 0.0
    %105 = vmatpush1.msra.mxu0 0.0
    %106 = vmatprep.subr.mxu0 0.0
    %107 = vmatpush1.msra.mxu0 0.0
    %108 = vmatprep.subr.mxu0 0.0
    %109 = vmatpush1.msra.mxu0 0.0
    %110 = vmatprep.subr.mxu0 0.0
    %111 = vmatpush1.msra.mxu0 0.0
    %112 = vmatprep.subr.mxu0 0.0
    %113 = vmatpush1.msra.mxu0 0.0
    %114 = vmatprep.subr.mxu0 0.0
    %115 = vmatpush1.msra.mxu0 0.0
    %116 = vmatprep.subr.mxu0 0.0
    %117 = vmatpush1.msra.mxu0 0.0
    %118 = vmatprep.subr.mxu0 0.0
    %119 = vmatpush1.msra.mxu0 0.0
    %120 = vmatprep.subr.mxu0 0.0
    %121 = vmatpush1.msra.mxu0 0.0
    %122 = vmatprep.subr.mxu0 0.0
    %123 = vmatpush1.msra.mxu0 0.0
    %124 = vmatprep.subr.mxu0 0.0
    %125 = vmatpush1.msra.mxu0 0.0
    %126 = vmatprep.subr.mxu0 0.0
    %127 = vmatpush1.msra.mxu0 0.0
    %128 = vmatprep.subr.mxu0 0.0
    %129 = vmatpush1.msra.mxu0 0.0
    %130 = vmatprep.subr.mxu0 0.0
    %131 = vmatpush1.msra.mxu0 0.0
    %132 = vmatprep.subr.mxu0 0.0
    %133 = vmatpush1.msra.mxu0 0.0
    %134 = vmatprep.subr.mxu0 0.0
    %135 = vmatpush1.msra.mxu0 0.0
    %136 = vmatprep.subr.mxu0 0.0
    %137 = vmatpush1.msra.mxu0 0.0
    %138 = vmatprep.subr.mxu0 0.0
    %139 = vmatpush1.msra.mxu0 0.0
    %140 = vmatprep.subr.mxu0 0.0
    %141 = vmatpush1.msra.mxu0 0.0
    %142 = vmatprep.subr.mxu0 0.0
    %143 = vmatpush1.msra.mxu0 0.0
    %144 = vmatprep.subr.mxu0 0.0
    %145 = vmatpush1.msra.mxu0 0.0
    %146 = vmatprep.subr.mxu0 0.0
    %147 = vmatpush1.msra.mxu0 0.0
    %148 = vmatprep.subr.mxu0 0.0
    %149 = vmatpush1.msra.mxu0 0.0
    %150 = vmatprep.subr.mxu0 0.0
    %151 = vmatpush1.msra.mxu0 0.0
    %152 = vmatprep.subr.mxu0 0.0
    %153 = vmatpush1.msra.mxu0 0.0
    %154 = vmatprep.subr.mxu0 0.0
    %155 = vmatpush1.msra.mxu0 0.0
    %156 = vmatprep.mubr.f32.mxu0 0.0
    %157 = vmatmul.mubr.f32.gmra.mrb[0].mxu0 %v77
    %v158 = vpop.f32.mrb[0].mxu0
    %v159 = vadd.f32 %v71, %v158
    %v160 = vpop.f32.mrb[0].mxu0
    %161 = vmatprep.mubr.f32.mxu0 0.0
    %162 = vmatmul.mubr.f32.gmra.mrb[0].mxu0 %v80
    %v163 = vpop.f32.mrb[0].mxu0
    %v164 = vadd.f32 %v72, %v163
    %v165 = vpop.f32.mrb[0].mxu0
    %166 = vmatprep.mubr.f32.mxu0 0.0
    %167 = vmatmul.mubr.f32.gmra.mrb[0].mxu0 %v83
    %v168 = vpop.f32.mrb[0].mxu0
    %v169 = vadd.f32 %v73, %v168
    %v170 = vpop.f32.mrb[0].mxu0
    %171 = vmatprep.mubr.f32.mxu0 0.0
    %172 = vmatmul.mubr.f32.gmra.mrb[0].mxu0 %v86
    %v173 = vpop.f32.mrb[0].mxu0
    %v174 = vadd.f32 %v74, %v173
    %v175 = vpop.f32.mrb[0].mxu0
    %176 = vdwg.mxu0
    %v177 = vld [vmem:[%s4] sm:$0xff]
    %v178 = vld [vmem:[%s4 + $0x8] sm:$0xff]
    %v179 = vld [vmem:[%s4 + $0x10] sm:$0xff]
    %v180 = vld [vmem:[%s4 + $0x18] sm:$0xff]
    %182 = vset.pattern.permute.xlu0 0
    %183 = vperm.xlu0 %182, %v177
    %v184 = vpop.permute.xlu0 %183
    %187 = vset.pattern.permute.xlu0 0
    %188 = vperm.xlu0 %187, %v178
    %v189 = vpop.permute.xlu0 %188
    %192 = vset.pattern.permute.xlu0 0
    %193 = vperm.xlu0 %192, %v179
    %v194 = vpop.permute.xlu0 %193
    %197 = vset.pattern.permute.xlu0 0
    %198 = vperm.xlu0 %197, %v180
    %v199 = vpop.permute.xlu0 %198
    %v201 = vadd.f32 %v159, %v184
    %v202 = vadd.f32 %v164, %v189
    %v203 = vadd.f32 %v169, %v194
    %v204 = vadd.f32 %v174, %v199
    %v205 = vmax.f32 %v201, 0.0
    %v206 = vmax.f32 %v202, 0.0
    %v207 = vmax.f32 %v203, 0.0
    %v208 = vmax.f32 %v204, 0.0
    %v209 = vld [vmem:[%s5] sm:$0xff]
    %v210 = vld [vmem:[%s5 + $0x8] sm:$0xff]
    %v211 = vld [vmem:[%s6] sm:$0xff]
    %v212 = vld [vmem:[%s6 + $0x8] sm:$0xff]
    %214 = vset.pattern.permute.xlu0 0
    %215 = vperm.xlu0 %214, %v211
    %v216 = vpop.permute.xlu0 %215
    %219 = vset.pattern.permute.xlu0 0
    %220 = vperm.xlu0 %219, %v212
    %v221 = vpop.permute.xlu0 %220
    %vm223 = vcmask 261120
    %v225 = vsel %vm223, %v209, 0
    %v228 = vsel %vm223, %v210, 0
    %230 = vmatprep.subr.mxu0 0.0
    %231 = vmatpush1.msra.mxu0 %v205
    %232 = vmatprep.subr.mxu0 0.0
    %233 = vmatpush1.msra.mxu0 %v206
    %234 = vmatprep.subr.mxu0 0.0
    %235 = vmatpush1.msra.mxu0 %v207
    %236 = vmatprep.subr.mxu0 0.0
    %237 = vmatpush1.msra.mxu0 %v208
    %238 = vmatprep.subr.mxu0 0.0
    %239 = vmatpush1.msra.mxu0 0.0
    %240 = vmatprep.subr.mxu0 0.0
    %241 = vmatpush1.msra.mxu0 0.0
    %242 = vmatprep.subr.mxu0 0.0
    %243 = vmatpush1.msra.mxu0 0.0
    %244 = vmatprep.subr.mxu0 0.0
    %245 = vmatpush1.msra.mxu0 0.0
    %246 = vmatprep.subr.mxu0 0.0
    %247 = vmatpush1.msra.mxu0 0.0
    %248 = vmatprep.subr.mxu0 0.0
    %249 = vmatpush1.msra.mxu0 0.0
    %250 = vmatprep.subr.mxu0 0.0
    %251 = vmatpush1.msra.mxu0 0.0
    %252 = vmatprep.subr.mxu0 0.0
    %253 = vmatpush1.msra.mxu0 0.0
    %254 = vmatprep.subr.mxu0 0.0
    %255 = vmatpush1.msra.mxu0 0.0
    %256 = vmatprep.subr.mxu0 0.0
    %257 = vmatpush1.msra.mxu0 0.0
    %258 = vmatprep.subr.mxu0 0.0
    %259 = vmatpush1.msra.mxu0 0.0
    %260 = vmatprep.subr.mxu0 0.0
    %261 = vmatpush1.msra.mxu0 0.0
    %262 = vmatprep.subr.mxu0 0.0
    %263 = vmatpush1.msra.mxu0 0.0
    %264 = vmatprep.subr.mxu0 0.0
    %265 = vmatpush1.msra.mxu0 0.0
    %266 = vmatprep.subr.mxu0 0.0
    %267 = vmatpush1.msra.mxu0 0.0
    %268 = vmatprep.subr.mxu0 0.0
    %269 = vmatpush1.msra.mxu0 0.0
    %270 = vmatprep.subr.mxu0 0.0
    %271 = vmatpush1.msra.mxu0 0.0
    %272 = vmatprep.subr.mxu0 0.0
    %273 = vmatpush1.msra.mxu0 0.0
    %274 = vmatprep.subr.mxu0 0.0
    %275 = vmatpush1.msra.mxu0 0.0
    %276 = vmatprep.subr.mxu0 0.0
    %277 = vmatpush1.msra.mxu0 0.0
    %278 = vmatprep.subr.mxu0 0.0
    %279 = vmatpush1.msra.mxu0 0.0
    %280 = vmatprep.subr.mxu0 0.0
    %281 = vmatpush1.msra.mxu0 0.0
    %282 = vmatprep.subr.mxu0 0.0
    %283 = vmatpush1.msra.mxu0 0.0
    %284 = vmatprep.subr.mxu0 0.0
    %285 = vmatpush1.msra.mxu0 0.0
    %286 = vmatprep.subr.mxu0 0.0
    %287 = vmatpush1.msra.mxu0 0.0
    %288 = vmatprep.subr.mxu0 0.0
    %289 = vmatpush1.msra.mxu0 0.0
    %290 = vmatprep.subr.mxu0 0.0
    %291 = vmatpush1.msra.mxu0 0.0
    %292 = vmatprep.subr.mxu0 0.0
    %293 = vmatpush1.msra.mxu0 0.0
    %294 = vmatprep.mubr.f32.mxu0 0.0
    %295 = vmatmul.mubr.f32.gmra.mrb[0].mxu0 %v225
    %v296 = vpop.f32.mrb[0].mxu0
    %v297 = vadd.f32 %v216, %v296
    %v298 = vpop.f32.mrb[0].mxu0
    %299 = vmatprep.mubr.f32.mxu0 0.0
    %300 = vmatmul.mubr.f32.gmra.mrb[0].mxu0 %v228
    %v301 = vpop.f32.mrb[0].mxu0
    %v302 = vadd.f32 %v221, %v301
    %v303 = vpop.f32.mrb[0].mxu0
    %304 = vdwg.mxu0
    %v305 = vmax.f32 %v297, 0.0
    %v306 = vmax.f32 %v302, 0.0
    %v307 = vld [vmem:[%s7] sm:$0x1]
    %v308 = vld [vmem:[#allocation2] sm:$0x1]
    %310 = vset.pattern.permute.xlu0 0
    %311 = vperm.xlu0 %310, %v308
    %v312 = vpop.permute.xlu0 %311
    %v314 = vlaneseq
    %v315 = vshrl.u32 %v314, 7
    %v316 = vsub.s32 0, %v315
    %v317 = vrot.slane %v312, %v316
    %vm318 = vcmask 130048
    %v320 = vsel %vm318, %v307, 0
    %322 = vmatprep.subr.mxu0 0.0
    %323 = vmatpush1.msra.mxu0 %v305
    %324 = vmatprep.subr.mxu0 0.0
    %325 = vmatpush1.msra.mxu0 %v306
    %326 = vmatprep.subr.mxu0 0.0
    %327 = vmatpush1.msra.mxu0 0.0
    %328 = vmatprep.subr.mxu0 0.0
    %329 = vmatpush1.msra.mxu0 0.0
    %330 = vmatprep.subr.mxu0 0.0
    %331 = vmatpush1.msra.mxu0 0.0
    %332 = vmatprep.subr.mxu0 0.0
    %333 = vmatpush1.msra.mxu0 0.0
    %334 = vmatprep.subr.mxu0 0.0
    %335 = vmatpush1.msra.mxu0 0.0
    %336 = vmatprep.subr.mxu0 0.0
    %337 = vmatpush1.msra.mxu0 0.0
    %338 = vmatprep.subr.mxu0 0.0
    %339 = vmatpush1.msra.mxu0 0.0
    %340 = vmatprep.subr.mxu0 0.0
    %341 = vmatpush1.msra.mxu0 0.0
    %342 = vmatprep.subr.mxu0 0.0
    %343 = vmatpush1.msra.mxu0 0.0
    %344 = vmatprep.subr.mxu0 0.0
    %345 = vmatpush1.msra.mxu0 0.0
    %346 = vmatprep.subr.mxu0 0.0
    %347 = vmatpush1.msra.mxu0 0.0
    %348 = vmatprep.subr.mxu0 0.0
    %349 = vmatpush1.msra.mxu0 0.0
    %350 = vmatprep.subr.mxu0 0.0
    %351 = vmatpush1.msra.mxu0 0.0
    %352 = vmatprep.subr.mxu0 0.0
    %353 = vmatpush1.msra.mxu0 0.0
    %354 = vmatprep.subr.mxu0 0.0
    %355 = vmatpush1.msra.mxu0 0.0
    %356 = vmatprep.subr.mxu0 0.0
    %357 = vmatpush1.msra.mxu0 0.0
    %358 = vmatprep.subr.mxu0 0.0
    %359 = vmatpush1.msra.mxu0 0.0
    %360 = vmatprep.subr.mxu0 0.0
    %361 = vmatpush1.msra.mxu0 0.0
    %362 = vmatprep.subr.mxu0 0.0
    %363 = vmatpush1.msra.mxu0 0.0
    %364 = vmatprep.subr.mxu0 0.0
    %365 = vmatpush1.msra.mxu0 0.0
    %366 = vmatprep.subr.mxu0 0.0
    %367 = vmatpush1.msra.mxu0 0.0
    %368 = vmatprep.subr.mxu0 0.0
    %369 = vmatpush1.msra.mxu0 0.0
    %370 = vmatprep.subr.mxu0 0.0
    %371 = vmatpush1.msra.mxu0 0.0
    %372 = vmatprep.subr.mxu0 0.0
    %373 = vmatpush1.msra.mxu0 0.0
    %374 = vmatprep.subr.mxu0 0.0
    %375 = vmatpush1.msra.mxu0 0.0
    %376 = vmatprep.subr.mxu0 0.0
    %377 = vmatpush1.msra.mxu0 0.0
    %378 = vmatprep.subr.mxu0 0.0
    %379 = vmatpush1.msra.mxu0 0.0
    %380 = vmatprep.subr.mxu0 0.0
    %381 = vmatpush1.msra.mxu0 0.0
    %382 = vmatprep.subr.mxu0 0.0
    %383 = vmatpush1.msra.mxu0 0.0
    %384 = vmatprep.subr.mxu0 0.0
    %385 = vmatpush1.msra.mxu0 0.0
    %386 = vmatprep.mubr.f32.mxu0 0.0
    %387 = vmatmul.mubr.f32.gmra.mrb[0].mxu0 %v320
    %v388 = vpop.f32.mrb[0].mxu0
    %v389 = vadd.f32 %v317, %v388
    %v390 = vpop.f32.mrb[0].mxu0
    %391 = vdwg.mxu0
    %vm392 = vcmask 57344
    %393 = vst.msk [vmem:[#allocation3] sm:$0x1] %vm392, %v389
    // Predicated region
    $region38: #{tpu_custom_call.1} parent=1 // pred_check
      _
    $region39: #{tpu_custom_call.1} parent=1 // pred_check_branch
      %395 = sbr.rel (0) target = $region41
    $region40: #{tpu_custom_call.1} parent=1 // pred_region
      %s397 = ssub.s32 16, 16
      %398 = vsyncadd [#allocation4], %s397
      %s400 = sshll.u32 [#allocation3], 4
      %s401 = int_to_ptr.vmem [resolvable:$true] %s400
      %403 = dma.vmem_to_hbm [thread:$0]  %s401, 16, %s9, [#allocation4]
    $region41: #{tpu_custom_call.1} parent=1 // pred_fallthru
      _
    // Predicated region
    $region42: #{tpu_custom_call.1} parent=1 // pred_check
      _
    $region43: #{tpu_custom_call.1} parent=1 // pred_check_branch
      %405 = sbr.rel (0) target = $region45
    $region44: #{tpu_custom_call.1} parent=1 // pred_region
      %406 = dma.done [#allocation4], 16
    $region45: #{tpu_custom_call.1} parent=1 // pred_fallthru
      _
    %407 = vsyncpa [#allocation4], 1

</llo_original>
